<compile_context>
chip_gen: v7x
topology: tpu7x:2x2x1
jax: 0.10.0
libtpu: 0.0.40
codegen_flags: <defaults>
</compile_context>

<pallas_src>
import jax
import jax.numpy as jnp
from jax.experimental import pallas as pl
from jax.experimental.pallas import tpu as pltpu


def mlp_kernel(x_ref, w1_ref, b1_ref, w2_ref, b2_ref,
               w3_ref, b3_ref, w4_ref, b4_ref, o_ref):
    # One batch tile per grid step; all four layers fused in VMEM.
    x = x_ref[...]
    h1 = jax.nn.sigmoid(
        jnp.dot(x, w1_ref[...], preferred_element_type=jnp.float32) + b1_ref[...])
    h2 = jax.nn.sigmoid(
        jnp.dot(h1, w2_ref[...], preferred_element_type=jnp.float32) + b2_ref[...])
    h3 = jax.nn.sigmoid(
        jnp.dot(h2, w3_ref[...], preferred_element_type=jnp.float32) + b3_ref[...])
    out = jnp.dot(h3, w4_ref[...], preferred_element_type=jnp.float32) + b4_ref[...]
    o_ref[...] = out.astype(o_ref.dtype)


def mlp_forward(x, params, tb=1024):
    """x: [B, 10] float32. params: dict of (in,out) weights and (1,out) biases."""
    B, F_in = x.shape
    F_out = params["w4"].shape[1]

    # Batch tile: multiple of 8 (sublane), capped at `tb` (safe for all
    # generations' default scoped VMEM), never larger than B rounded up.
    TB = min(tb, B)
    TB = max(8, (TB // 8) * 8)

    # Pad the batch dim to a multiple of TB so the grid is exact; the padded
    # rows are discarded after the call.
    n_tiles = pl.cdiv(B, TB)
    B_pad = n_tiles * TB
    if B_pad != B:
        x = jnp.pad(x, ((0, B_pad - B), (0, 0)))

    w1, b1 = params["w1"], params["b1"]
    w2, b2 = params["w2"], params["b2"]
    w3, b3 = params["w3"], params["b3"]
    w4, b4 = params["w4"], params["b4"]

    # Explicit per-operand specs (no late-binding closures).
    x_spec = pl.BlockSpec((TB, F_in), lambda i: (i, 0))
    # Weights/biases: full-array blocks, constant index_map -> resident in VMEM.
    w1_spec = pl.BlockSpec(w1.shape, lambda i: (0, 0))
    b1_spec = pl.BlockSpec(b1.shape, lambda i: (0, 0))
    w2_spec = pl.BlockSpec(w2.shape, lambda i: (0, 0))
    b2_spec = pl.BlockSpec(b2.shape, lambda i: (0, 0))
    w3_spec = pl.BlockSpec(w3.shape, lambda i: (0, 0))
    b3_spec = pl.BlockSpec(b3.shape, lambda i: (0, 0))
    w4_spec = pl.BlockSpec(w4.shape, lambda i: (0, 0))
    b4_spec = pl.BlockSpec(b4.shape, lambda i: (0, 0))
    out_spec = pl.BlockSpec((TB, F_out), lambda i: (i, 0))

    out = pl.pallas_call(
        mlp_kernel,
        out_shape=jax.ShapeDtypeStruct((B_pad, F_out), jnp.float32),
        grid=(n_tiles,),
        in_specs=[x_spec,
                  w1_spec, b1_spec,
                  w2_spec, b2_spec,
                  w3_spec, b3_spec,
                  w4_spec, b4_spec],
        out_specs=out_spec,
        compiler_params=pltpu.CompilerParams(
            # Batch tiles are independent: shard across TCs on v7x (no-op on
            # single-TC v5e/v6e).
            dimension_semantics=("parallel",),
        ),
    )(x, w1, b1, w2, b2, w3, b3, w4, b4)

    return out[:B]


def init_params(key):
    """Deterministic init matching nn.Linear shapes (weights stored transposed)."""
    dims = [(10, 16), (16, 32), (32, 16), (16, 4)]
    params = {}
    for i, (fan_in, fan_out) in enumerate(dims, start=1):
        key, kw, kb = jax.random.split(key, 3)
        bound = 1.0 / (fan_in ** 0.5)  # PyTorch default uniform(-1/sqrt(in), 1/sqrt(in))
        params[f"w{i}"] = jax.random.uniform(
            kw, (fan_in, fan_out), jnp.float32, -bound, bound)
        params[f"b{i}"] = jax.random.uniform(
            kb, (1, fan_out), jnp.float32, -bound, bound)
    return params


def mlp_reference(x, params):
    h = jax.nn.sigmoid(x @ params["w1"] + params["b1"])
    h = jax.nn.sigmoid(h @ params["w2"] + params["b2"])
    h = jax.nn.sigmoid(h @ params["w3"] + params["b3"])
    return h @ params["w4"] + params["b4"]


if __name__ == "__main__":
    key = jax.random.PRNGKey(0)
    kp, kx1, kx2 = jax.random.split(key, 3)
    params = init_params(kp)

    # Small demo batch (single grid step).
    x_small = jax.random.normal(kx1, (8, 10), jnp.float32)
    out_small = jax.block_until_ready(mlp_forward(x_small, params))
    ref_small = mlp_reference(x_small, params)
    assert out_small.shape == (8, 4)
    assert jnp.allclose(out_small, ref_small, atol=1e-5, rtol=1e-5)

    # Non-multiple-of-8 batch: exercises the pad + batch-grid path.
    x_odd = jax.random.normal(kx2, (10, 10), jnp.float32)
    out_odd = jax.block_until_ready(mlp_forward(x_odd, params))
    ref_odd = mlp_reference(x_odd, params)
    assert out_odd.shape == (10, 4)
    assert jnp.allclose(out_odd, ref_odd, atol=1e-5, rtol=1e-5)

    print("KERNEL_OK")
</pallas_src>

<mosaic_0001>
module attributes {stable_mosaic.version = 11 : i64} {
  func.func @mlp_kernel(%arg0: i32, %arg1: memref<8x10xf32, #tpu.memory_space<vmem>>, %arg2: memref<10x16xf32, #tpu.memory_space<vmem>>, %arg3: memref<1x16xf32, #tpu.memory_space<vmem>>, %arg4: memref<16x32xf32, #tpu.memory_space<vmem>>, %arg5: memref<1x32xf32, #tpu.memory_space<vmem>>, %arg6: memref<32x16xf32, #tpu.memory_space<vmem>>, %arg7: memref<1x16xf32, #tpu.memory_space<vmem>>, %arg8: memref<16x4xf32, #tpu.memory_space<vmem>>, %arg9: memref<1x4xf32, #tpu.memory_space<vmem>>, %arg10: memref<8x4xf32, #tpu.memory_space<vmem>>) attributes {dimension_semantics = [#tpu.dimension_semantics<parallel>], iteration_bounds = array<i64: 1>, scalar_prefetch = 0 : i64, scratch_operands = 0 : i64, tpu.core_type = #tpu.core_type<tc>, window_params = [{transform_indices = @transform_0, window_bounds = array<i64: 8, 10>}, {pipeline_mode = #tpu.pipeline_mode<synchronous>, transform_indices = @transform_1, window_bounds = array<i64: 10, 16>}, {pipeline_mode = #tpu.pipeline_mode<synchronous>, transform_indices = @transform_2, window_bounds = array<i64: 1, 16>}, {pipeline_mode = #tpu.pipeline_mode<synchronous>, transform_indices = @transform_3, window_bounds = array<i64: 16, 32>}, {pipeline_mode = #tpu.pipeline_mode<synchronous>, transform_indices = @transform_4, window_bounds = array<i64: 1, 32>}, {pipeline_mode = #tpu.pipeline_mode<synchronous>, transform_indices = @transform_5, window_bounds = array<i64: 32, 16>}, {pipeline_mode = #tpu.pipeline_mode<synchronous>, transform_indices = @transform_6, window_bounds = array<i64: 1, 16>}, {pipeline_mode = #tpu.pipeline_mode<synchronous>, transform_indices = @transform_7, window_bounds = array<i64: 16, 4>}, {pipeline_mode = #tpu.pipeline_mode<synchronous>, transform_indices = @transform_8, window_bounds = array<i64: 1, 4>}, {transform_indices = @transform_9, window_bounds = array<i64: 8, 4>}]} {
    %c0 = arith.constant 0 : index
    %c0_0 = arith.constant 0 : index
    %0 = vector.load %arg1[%c0, %c0_0] : memref<8x10xf32, #tpu.memory_space<vmem>>, vector<8x10xf32>
    %c0_1 = arith.constant 0 : index
    %c0_2 = arith.constant 0 : index
    %1 = vector.load %arg2[%c0_1, %c0_2] : memref<10x16xf32, #tpu.memory_space<vmem>>, vector<10x16xf32>
    %cst = arith.constant dense<0.000000e+00> : vector<8x16xf32>
    %2 = tpu.matmul %0, %1, %cst {dimension_numbers = #tpu.dot_dimension_numbers<[1], [0], [0], [1], [0, 0, 1, 1], [], []>} : vector<8x10xf32>, vector<10x16xf32>, vector<8x16xf32> -> vector<8x16xf32>
    %c0_3 = arith.constant 0 : index
    %c0_4 = arith.constant 0 : index
    %3 = vector.load %arg3[%c0_3, %c0_4] : memref<1x16xf32, #tpu.memory_space<vmem>>, vector<1x16xf32>
    %4 = vector.broadcast %3 : vector<1x16xf32> to vector<8x16xf32>
    %5 = arith.addf %2, %4 : vector<8x16xf32>
    %6 = arith.negf %5 : vector<8x16xf32>
    %7 = math.exp %6 : vector<8x16xf32>
    %cst_5 = arith.constant 1.000000e+00 : f32
    %8 = vector.broadcast %cst_5 : f32 to vector<8x16xf32>
    %9 = arith.addf %8, %7 : vector<8x16xf32>
    %10 = arith.divf %8, %9 : vector<8x16xf32>
    %c0_6 = arith.constant 0 : index
    %c0_7 = arith.constant 0 : index
    %11 = vector.load %arg4[%c0_6, %c0_7] : memref<16x32xf32, #tpu.memory_space<vmem>>, vector<16x32xf32>
    %cst_8 = arith.constant dense<0.000000e+00> : vector<8x32xf32>
    %12 = tpu.matmul %10, %11, %cst_8 {dimension_numbers = #tpu.dot_dimension_numbers<[1], [0], [0], [1], [0, 0, 1, 1], [], []>} : vector<8x16xf32>, vector<16x32xf32>, vector<8x32xf32> -> vector<8x32xf32>
    %c0_9 = arith.constant 0 : index
    %c0_10 = arith.constant 0 : index
    %13 = vector.load %arg5[%c0_9, %c0_10] : memref<1x32xf32, #tpu.memory_space<vmem>>, vector<1x32xf32>
    %14 = vector.broadcast %13 : vector<1x32xf32> to vector<8x32xf32>
    %15 = arith.addf %12, %14 : vector<8x32xf32>
    %16 = arith.negf %15 : vector<8x32xf32>
    %17 = math.exp %16 : vector<8x32xf32>
    %cst_11 = arith.constant 1.000000e+00 : f32
    %18 = vector.broadcast %cst_11 : f32 to vector<8x32xf32>
    %19 = arith.addf %18, %17 : vector<8x32xf32>
    %20 = arith.divf %18, %19 : vector<8x32xf32>
    %c0_12 = arith.constant 0 : index
    %c0_13 = arith.constant 0 : index
    %21 = vector.load %arg6[%c0_12, %c0_13] : memref<32x16xf32, #tpu.memory_space<vmem>>, vector<32x16xf32>
    %cst_14 = arith.constant dense<0.000000e+00> : vector<8x16xf32>
    %22 = tpu.matmul %20, %21, %cst_14 {dimension_numbers = #tpu.dot_dimension_numbers<[1], [0], [0], [1], [0, 0, 1, 1], [], []>} : vector<8x32xf32>, vector<32x16xf32>, vector<8x16xf32> -> vector<8x16xf32>
    %c0_15 = arith.constant 0 : index
    %c0_16 = arith.constant 0 : index
    %23 = vector.load %arg7[%c0_15, %c0_16] : memref<1x16xf32, #tpu.memory_space<vmem>>, vector<1x16xf32>
    %24 = vector.broadcast %23 : vector<1x16xf32> to vector<8x16xf32>
    %25 = arith.addf %22, %24 : vector<8x16xf32>
    %26 = arith.negf %25 : vector<8x16xf32>
    %27 = math.exp %26 : vector<8x16xf32>
    %cst_17 = arith.constant 1.000000e+00 : f32
    %28 = vector.broadcast %cst_17 : f32 to vector<8x16xf32>
    %29 = arith.addf %28, %27 : vector<8x16xf32>
    %30 = arith.divf %28, %29 : vector<8x16xf32>
    %c0_18 = arith.constant 0 : index
    %c0_19 = arith.constant 0 : index
    %31 = vector.load %arg8[%c0_18, %c0_19] : memref<16x4xf32, #tpu.memory_space<vmem>>, vector<16x4xf32>
    %cst_20 = arith.constant dense<0.000000e+00> : vector<8x4xf32>
    %32 = tpu.matmul %30, %31, %cst_20 {dimension_numbers = #tpu.dot_dimension_numbers<[1], [0], [0], [1], [0, 0, 1, 1], [], []>} : vector<8x16xf32>, vector<16x4xf32>, vector<8x4xf32> -> vector<8x4xf32>
    %c0_21 = arith.constant 0 : index
    %c0_22 = arith.constant 0 : index
    %33 = vector.load %arg9[%c0_21, %c0_22] : memref<1x4xf32, #tpu.memory_space<vmem>>, vector<1x4xf32>
    %34 = vector.broadcast %33 : vector<1x4xf32> to vector<8x4xf32>
    %35 = arith.addf %32, %34 : vector<8x4xf32>
    %c0_23 = arith.constant 0 : index
    %c0_24 = arith.constant 0 : index
    %36 = vector.load %arg10[%c0_23, %c0_24] : memref<8x4xf32, #tpu.memory_space<vmem>>, vector<8x4xf32>
    tpu.vector_store %arg10[%c0_23, %c0_24], %35 {strides = array<i32>} : memref<8x4xf32, #tpu.memory_space<vmem>>, vector<8x4xf32>,
    return
  }
  func.func @transform_0(%arg0: i32) -> (i32, i32) {
    %c0_i32 = arith.constant 0 : i32
    %c0_i32_0 = arith.constant 0 : i32
    return %arg0, %c0_i32 : i32, i32
  }
  func.func @transform_1(%arg0: i32) -> (i32, i32) {
    %c0_i32 = arith.constant 0 : i32
    %c0_i32_0 = arith.constant 0 : i32
    %c0_i32_1 = arith.constant 0 : i32
    return %c0_i32, %c0_i32_0 : i32, i32
  }
  func.func @transform_2(%arg0: i32) -> (i32, i32) {
    %c0_i32 = arith.constant 0 : i32
    %c0_i32_0 = arith.constant 0 : i32
    %c0_i32_1 = arith.constant 0 : i32
    return %c0_i32, %c0_i32_0 : i32, i32
  }
  func.func @transform_3(%arg0: i32) -> (i32, i32) {
    %c0_i32 = arith.constant 0 : i32
    %c0_i32_0 = arith.constant 0 : i32
    %c0_i32_1 = arith.constant 0 : i32
    return %c0_i32, %c0_i32_0 : i32, i32
  }
  func.func @transform_4(%arg0: i32) -> (i32, i32) {
    %c0_i32 = arith.constant 0 : i32
    %c0_i32_0 = arith.constant 0 : i32
    %c0_i32_1 = arith.constant 0 : i32
    return %c0_i32, %c0_i32_0 : i32, i32
  }
  func.func @transform_5(%arg0: i32) -> (i32, i32) {
    %c0_i32 = arith.constant 0 : i32
    %c0_i32_0 = arith.constant 0 : i32
    %c0_i32_1 = arith.constant 0 : i32
    return %c0_i32, %c0_i32_0 : i32, i32
  }
  func.func @transform_6(%arg0: i32) -> (i32, i32) {
    %c0_i32 = arith.constant 0 : i32
    %c0_i32_0 = arith.constant 0 : i32
    %c0_i32_1 = arith.constant 0 : i32
    return %c0_i32, %c0_i32_0 : i32, i32
  }
  func.func @transform_7(%arg0: i32) -> (i32, i32) {
    %c0_i32 = arith.constant 0 : i32
    %c0_i32_0 = arith.constant 0 : i32
    %c0_i32_1 = arith.constant 0 : i32
    return %c0_i32, %c0_i32_0 : i32, i32
  }
  func.func @transform_8(%arg0: i32) -> (i32, i32) {
    %c0_i32 = arith.constant 0 : i32
    %c0_i32_0 = arith.constant 0 : i32
    %c0_i32_1 = arith.constant 0 : i32
    return %c0_i32, %c0_i32_0 : i32, i32
  }
  func.func @transform_9(%arg0: i32) -> (i32, i32) {
    %c0_i32 = arith.constant 0 : i32
    %c0_i32_0 = arith.constant 0 : i32
    return %arg0, %c0_i32 : i32, i32
  }
}

</mosaic_0001>

<llo_original>
// kernel: tpu_custom_call.1
$region0: #{tpu_custom_call.1}
  #allocation0 [shape = 'u32[]', space=smem, size = 0x4, offset = 0x4, fixed_abs, tag = 'smem constant byte address 0x4 - core index']
  #allocation1 [shape = 'u32[144,128]{1,0:T(1,128)}', space=vmem, size = 0x12000, scoped, tag = 'internal scratch']
  %s0 = inlined_call_operand.vmem [shape: f32[8,10], index: 0, kind: input, shape index: {}]
  %s1 = inlined_call_operand.vmem [shape: f32[10,16], index: 1, kind: input, shape index: {}]
  %s2 = inlined_call_operand.vmem [shape: f32[1,16], index: 2, kind: input, shape index: {}]
  %s3 = inlined_call_operand.vmem [shape: f32[16,32], index: 3, kind: input, shape index: {}]
  %s4 = inlined_call_operand.vmem [shape: f32[1,32], index: 4, kind: input, shape index: {}]
  %s5 = inlined_call_operand.vmem [shape: f32[32,16], index: 5, kind: input, shape index: {}]
  %s6 = inlined_call_operand.vmem [shape: f32[1,16], index: 6, kind: input, shape index: {}]
  %s7 = inlined_call_operand.vmem [shape: f32[16,4], index: 7, kind: input, shape index: {}]
  %s8 = inlined_call_operand.vmem [shape: f32[1,4], index: 8, kind: input, shape index: {}]
  %s9 = inlined_call_operand.vmem [shape: f32[8,4], index: 9, kind: output, shape index: {}]
  %s10 = sld [smem:[#allocation0]]
  $region46: #{tpu_custom_call.1} parent=0
    _
  %s12 = ssub.s32 1, %s10
  %s13 = scalar_select 0, %s12, %s10
  // Predicated region
  $region2: #{tpu_custom_call.1} parent=0 // pred_check
    _
  $region3: #{tpu_custom_call.1} parent=0 // pred_check_branch
    %15 = sbr.rel (0) target = $region5
  $region4: #{tpu_custom_call.1} parent=0 // pred_region
    _
  $region5: #{tpu_custom_call.1} parent=0 // pred_fallthru
    _
  // Predicated region
  $region6: #{tpu_custom_call.1} parent=0 // pred_check
    _
  $region7: #{tpu_custom_call.1} parent=0 // pred_check_branch
    %17 = sbr.rel (0) target = $region9
  $region8: #{tpu_custom_call.1} parent=0 // pred_region
    _
  $region9: #{tpu_custom_call.1} parent=0 // pred_fallthru
    _
  // Predicated region
  $region10: #{tpu_custom_call.1} parent=0 // pred_check
    _
  $region11: #{tpu_custom_call.1} parent=0 // pred_check_branch
    %19 = sbr.rel (0) target = $region13
  $region12: #{tpu_custom_call.1} parent=0 // pred_region
    _
  $region13: #{tpu_custom_call.1} parent=0 // pred_fallthru
    _
  // Predicated region
  $region14: #{tpu_custom_call.1} parent=0 // pred_check
    _
  $region15: #{tpu_custom_call.1} parent=0 // pred_check_branch
    %21 = sbr.rel (0) target = $region17
  $region16: #{tpu_custom_call.1} parent=0 // pred_region
    _
  $region17: #{tpu_custom_call.1} parent=0 // pred_fallthru
    _
  // Predicated region
  $region18: #{tpu_custom_call.1} parent=0 // pred_check
    _
  $region19: #{tpu_custom_call.1} parent=0 // pred_check_branch
    %23 = sbr.rel (0) target = $region21
  $region20: #{tpu_custom_call.1} parent=0 // pred_region
    _
  $region21: #{tpu_custom_call.1} parent=0 // pred_fallthru
    _
  // Predicated region
  $region22: #{tpu_custom_call.1} parent=0 // pred_check
    _
  $region23: #{tpu_custom_call.1} parent=0 // pred_check_branch
    %25 = sbr.rel (0) target = $region25
  $region24: #{tpu_custom_call.1} parent=0 // pred_region
    _
  $region25: #{tpu_custom_call.1} parent=0 // pred_fallthru
    _
  // Predicated region
  $region26: #{tpu_custom_call.1} parent=0 // pred_check
    _
  $region27: #{tpu_custom_call.1} parent=0 // pred_check_branch
    %27 = sbr.rel (0) target = $region29
  $region28: #{tpu_custom_call.1} parent=0 // pred_region
    _
  $region29: #{tpu_custom_call.1} parent=0 // pred_fallthru
    _
  // Predicated region
  $region30: #{tpu_custom_call.1} parent=0 // pred_check
    _
  $region31: #{tpu_custom_call.1} parent=0 // pred_check_branch
    %29 = sbr.rel (0) target = $region33
  $region32: #{tpu_custom_call.1} parent=0 // pred_region
    _
  $region33: #{tpu_custom_call.1} parent=0 // pred_fallthru
    _
  // Predicated region
  $region34: #{tpu_custom_call.1} parent=0 // pred_check
    _
  $region35: #{tpu_custom_call.1} parent=0 // pred_check_branch
    %31 = sbr.rel (0) target = $region37
  $region36: #{tpu_custom_call.1} parent=0 // pred_region
    _
  $region37: #{tpu_custom_call.1} parent=0 // pred_fallthru
    _
  %v32 = vld [vmem:[%s0] sm:$0xff]
  %v33 = vld [vmem:[%s1] sm:$0xff]
  %v34 = vld [vmem:[%s1 + $0x8] sm:$0x3]
  %v35 = vld [vmem:[%s2] sm:$0x1]
  %v37 = vlaneseq
  %v38 = vshrl.u32 %v37, 7
  %v39 = vsub.s32 0, %v38
  %v40 = vrot.slane %v35, %v39
  %vm42 = vcmask 80896
  %v44 = vsel %vm42, %v32, 0
  %vm46 = vcmask 1041408
  %v48 = vsel %vm46, %v34, 0
  %50 = vmatprep.subr.mxu0 0.0
  %51 = vmatpush1.msra.mxu0 %v33
  %52 = vmatprep.subr.mxu0 0.0
  %53 = vmatpush1.msra.mxu0 %v48
  %54 = vmatprep.subr.mxu0 0.0
  %55 = vmatpush1.msra.mxu0 0.0
  %56 = vmatprep.subr.mxu0 0.0
  %57 = vmatpush1.msra.mxu0 0.0
  %58 = vmatprep.subr.mxu0 0.0
  %59 = vmatpush1.msra.mxu0 0.0
  %60 = vmatprep.subr.mxu0 0.0
  %61 = vmatpush1.msra.mxu0 0.0
  %62 = vmatprep.subr.mxu0 0.0
  %63 = vmatpush1.msra.mxu0 0.0
  %64 = vmatprep.subr.mxu0 0.0
  %65 = vmatpush1.msra.mxu0 0.0
  %66 = vmatprep.subr.mxu0 0.0
  %67 = vmatpush1.msra.mxu0 0.0
  %68 = vmatprep.subr.mxu0 0.0
  %69 = vmatpush1.msra.mxu0 0.0
  %70 = vmatprep.subr.mxu0 0.0
  %71 = vmatpush1.msra.mxu0 0.0
  %72 = vmatprep.subr.mxu0 0.0
  %73 = vmatpush1.msra.mxu0 0.0
  %74 = vmatprep.subr.mxu0 0.0
  %75 = vmatpush1.msra.mxu0 0.0
  %76 = vmatprep.subr.mxu0 0.0
  %77 = vmatpush1.msra.mxu0 0.0
  %78 = vmatprep.subr.mxu0 0.0
  %79 = vmatpush1.msra.mxu0 0.0
  %80 = vmatprep.subr.mxu0 0.0
  %81 = vmatpush1.msra.mxu0 0.0
  %82 = vmatprep.subr.mxu0 0.0
  %83 = vmatpush1.msra.mxu0 0.0
  %84 = vmatprep.subr.mxu0 0.0
  %85 = vmatpush1.msra.mxu0 0.0
  %86 = vmatprep.subr.mxu0 0.0
  %87 = vmatpush1.msra.mxu0 0.0
  %88 = vmatprep.subr.mxu0 0.0
  %89 = vmatpush1.msra.mxu0 0.0
  %90 = vmatprep.subr.mxu0 0.0
  %91 = vmatpush1.msra.mxu0 0.0
  %92 = vmatprep.subr.mxu0 0.0
  %93 = vmatpush1.msra.mxu0 0.0
  %94 = vmatprep.subr.mxu0 0.0
  %95 = vmatpush1.msra.mxu0 0.0
  %96 = vmatprep.subr.mxu0 0.0
  %97 = vmatpush1.msra.mxu0 0.0
  %98 = vmatprep.subr.mxu0 0.0
  %99 = vmatpush1.msra.mxu0 0.0
  %100 = vmatprep.subr.mxu0 0.0
  %101 = vmatpush1.msra.mxu0 0.0
  %102 = vmatprep.subr.mxu0 0.0
  %103 = vmatpush1.msra.mxu0 0.0
  %104 = vmatprep.subr.mxu0 0.0
  %105 = vmatpush1.msra.mxu0 0.0
  %106 = vmatprep.subr.mxu0 0.0
  %107 = vmatpush1.msra.mxu0 0.0
  %108 = vmatprep.subr.mxu0 0.0
  %109 = vmatpush1.msra.mxu0 0.0
  %110 = vmatprep.subr.mxu0 0.0
  %111 = vmatpush1.msra.mxu0 0.0
  %112 = vmatprep.subr.mxu0 0.0
  %113 = vmatpush1.msra.mxu0 0.0
  %114 = vmatprep.mubr.f32.mxu0 0.0
  %115 = vmatmul.mubr.f32.gmra.mrb[0].mxu0 %v44
  %v116 = vpop.f32.mrb[0].mxu0
  %v117 = vadd.f32 %v40, %v116
  %v118 = vpop.f32.mrb[0].mxu0
  %119 = vdwg.mxu0
  %v120 = vxor.u32 %v117, 2147483648
  %v121 = vmul.f32 %v120, 1.442695
  %v122 = vpow.pop %v121
  %v123 = vadd.f32 %v122, 1.0
  %v124 = vrcp.pop %v123
  %v125 = vmul.f32 1.0, %v124
  %v126 = vld [vmem:[%s3] sm:$0xff]
  %v127 = vld [vmem:[%s3 + $0x8] sm:$0xff]
  %v128 = vld [vmem:[%s4] sm:$0x1]
  %v130 = vlaneseq
  %v131 = vshrl.u32 %v130, 7
  %v132 = vsub.s32 0, %v131
  %v133 = vrot.slane %v128, %v132
  %vm135 = vcmask 130048
  %v137 = vsel %vm135, %v125, 0
  %139 = vmatprep.subr.mxu0 0.0
  %140 = vmatpush1.msra.mxu0 %v126
  %141 = vmatprep.subr.mxu0 0.0
  %142 = vmatpush1.msra.mxu0 %v127
  %143 = vmatprep.subr.mxu0 0.0
  %144 = vmatpush1.msra.mxu0 0.0
  %145 = vmatprep.subr.mxu0 0.0
  %146 = vmatpush1.msra.mxu0 0.0
  %147 = vmatprep.subr.mxu0 0.0
  %148 = vmatpush1.msra.mxu0 0.0
  %149 = vmatprep.subr.mxu0 0.0
  %150 = vmatpush1.msra.mxu0 0.0
  %151 = vmatprep.subr.mxu0 0.0
  %152 = vmatpush1.msra.mxu0 0.0
  %153 = vmatprep.subr.mxu0 0.0
  %154 = vmatpush1.msra.mxu0 0.0
  %155 = vmatprep.subr.mxu0 0.0
  %156 = vmatpush1.msra.mxu0 0.0
  %157 = vmatprep.subr.mxu0 0.0
  %158 = vmatpush1.msra.mxu0 0.0
  %159 = vmatprep.subr.mxu0 0.0
  %160 = vmatpush1.msra.mxu0 0.0
  %161 = vmatprep.subr.mxu0 0.0
  %162 = vmatpush1.msra.mxu0 0.0
  %163 = vmatprep.subr.mxu0 0.0
  %164 = vmatpush1.msra.mxu0 0.0
  %165 = vmatprep.subr.mxu0 0.0
  %166 = vmatpush1.msra.mxu0 0.0
  %167 = vmatprep.subr.mxu0 0.0
  %168 = vmatpush1.msra.mxu0 0.0
  %169 = vmatprep.subr.mxu0 0.0
  %170 = vmatpush1.msra.mxu0 0.0
  %171 = vmatprep.subr.mxu0 0.0
  %172 = vmatpush1.msra.mxu0 0.0
  %173 = vmatprep.subr.mxu0 0.0
  %174 = vmatpush1.msra.mxu0 0.0
  %175 = vmatprep.subr.mxu0 0.0
  %176 = vmatpush1.msra.mxu0 0.0
  %177 = vmatprep.subr.mxu0 0.0
  %178 = vmatpush1.msra.mxu0 0.0
  %179 = vmatprep.subr.mxu0 0.0
  %180 = vmatpush1.msra.mxu0 0.0
  %181 = vmatprep.subr.mxu0 0.0
  %182 = vmatpush1.msra.mxu0 0.0
  %183 = vmatprep.subr.mxu0 0.0
  %184 = vmatpush1.msra.mxu0 0.0
  %185 = vmatprep.subr.mxu0 0.0
  %186 = vmatpush1.msra.mxu0 0.0
  %187 = vmatprep.subr.mxu0 0.0
  %188 = vmatpush1.msra.mxu0 0.0
  %189 = vmatprep.subr.mxu0 0.0
  %190 = vmatpush1.msra.mxu0 0.0
  %191 = vmatprep.subr.mxu0 0.0
  %192 = vmatpush1.msra.mxu0 0.0
  %193 = vmatprep.subr.mxu0 0.0
  %194 = vmatpush1.msra.mxu0 0.0
  %195 = vmatprep.subr.mxu0 0.0
  %196 = vmatpush1.msra.mxu0 0.0
  %197 = vmatprep.subr.mxu0 0.0
  %198 = vmatpush1.msra.mxu0 0.0
  %199 = vmatprep.subr.mxu0 0.0
  %200 = vmatpush1.msra.mxu0 0.0
  %201 = vmatprep.subr.mxu0 0.0
  %202 = vmatpush1.msra.mxu0 0.0
  %203 = vmatprep.mubr.f32.mxu0 0.0
  %204 = vmatmul.mubr.f32.gmra.mrb[0].mxu0 %v137
  %v205 = vpop.f32.mrb[0].mxu0
  %v206 = vadd.f32 %v133, %v205
  %v207 = vpop.f32.mrb[0].mxu0
  %208 = vdwg.mxu0
  %v209 = vxor.u32 %v206, 2147483648
  %v210 = vmul.f32 %v209, 1.442695
  %v211 = vpow.pop %v210
  %v212 = vadd.f32 %v211, 1.0
  %v213 = vrcp.pop %v212
  %v214 = vmul.f32 1.0, %v213
  %v215 = vld [vmem:[%s5] sm:$0xff]
  %v216 = vld [vmem:[%s5 + $0x8] sm:$0xff]
  %v217 = vld [vmem:[%s5 + $0x10] sm:$0xff]
  %v218 = vld [vmem:[%s5 + $0x18] sm:$0xff]
  %v219 = vld [vmem:[%s6] sm:$0x1]
  %v221 = vlaneseq
  %v222 = vshrl.u32 %v221, 7
  %v223 = vsub.s32 0, %v222
  %v224 = vrot.slane %v219, %v223
  %vm226 = vcmask 261120
  %v228 = vsel %vm226, %v214, 0
  %230 = vmatprep.subr.mxu0 0.0
  %231 = vmatpush1.msra.mxu0 %v215
  %232 = vmatprep.subr.mxu0 0.0
  %233 = vmatpush1.msra.mxu0 %v216
  %234 = vmatprep.subr.mxu0 0.0
  %235 = vmatpush1.msra.mxu0 %v217
  %236 = vmatprep.subr.mxu0 0.0
  %237 = vmatpush1.msra.mxu0 %v218
  %238 = vmatprep.subr.mxu0 0.0
  %239 = vmatpush1.msra.mxu0 0.0
  %240 = vmatprep.subr.mxu0 0.0
  %241 = vmatpush1.msra.mxu0 0.0
  %242 = vmatprep.subr.mxu0 0.0
  %243 = vmatpush1.msra.mxu0 0.0
  %244 = vmatprep.subr.mxu0 0.0
  %245 = vmatpush1.msra.mxu0 0.0
  %246 = vmatprep.subr.mxu0 0.0
  %247 = vmatpush1.msra.mxu0 0.0
  %248 = vmatprep.subr.mxu0 0.0
  %249 = vmatpush1.msra.mxu0 0.0
  %250 = vmatprep.subr.mxu0 0.0
  %251 = vmatpush1.msra.mxu0 0.0
  %252 = vmatprep.subr.mxu0 0.0
  %253 = vmatpush1.msra.mxu0 0.0
  %254 = vmatprep.subr.mxu0 0.0
  %255 = vmatpush1.msra.mxu0 0.0
  %256 = vmatprep.subr.mxu0 0.0
  %257 = vmatpush1.msra.mxu0 0.0
  %258 = vmatprep.subr.mxu0 0.0
  %259 = vmatpush1.msra.mxu0 0.0
  %260 = vmatprep.subr.mxu0 0.0
  %261 = vmatpush1.msra.mxu0 0.0
  %262 = vmatprep.subr.mxu0 0.0
  %263 = vmatpush1.msra.mxu0 0.0
  %264 = vmatprep.subr.mxu0 0.0
  %265 = vmatpush1.msra.mxu0 0.0
  %266 = vmatprep.subr.mxu0 0.0
  %267 = vmatpush1.msra.mxu0 0.0
  %268 = vmatprep.subr.mxu0 0.0
  %269 = vmatpush1.msra.mxu0 0.0
  %270 = vmatprep.subr.mxu0 0.0
  %271 = vmatpush1.msra.mxu0 0.0
  %272 = vmatprep.subr.mxu0 0.0
  %273 = vmatpush1.msra.mxu0 0.0
  %274 = vmatprep.subr.mxu0 0.0
  %275 = vmatpush1.msra.mxu0 0.0
  %276 = vmatprep.subr.mxu0 0.0
  %277 = vmatpush1.msra.mxu0 0.0
  %278 = vmatprep.subr.mxu0 0.0
  %279 = vmatpush1.msra.mxu0 0.0
  %280 = vmatprep.subr.mxu0 0.0
  %281 = vmatpush1.msra.mxu0 0.0
  %282 = vmatprep.subr.mxu0 0.0
  %283 = vmatpush1.msra.mxu0 0.0
  %284 = vmatprep.subr.mxu0 0.0
  %285 = vmatpush1.msra.mxu0 0.0
  %286 = vmatprep.subr.mxu0 0.0
  %287 = vmatpush1.msra.mxu0 0.0
  %288 = vmatprep.subr.mxu0 0.0
  %289 = vmatpush1.msra.mxu0 0.0
  %290 = vmatprep.subr.mxu0 0.0
  %291 = vmatpush1.msra.mxu0 0.0
  %292 = vmatprep.subr.mxu0 0.0
  %293 = vmatpush1.msra.mxu0 0.0
  %294 = vmatprep.mubr.f32.mxu0 0.0
  %295 = vmatmul.mubr.f32.gmra.mrb[0].mxu0 %v228
  %v296 = vpop.f32.mrb[0].mxu0
  %v297 = vadd.f32 %v224, %v296
  %v298 = vpop.f32.mrb[0].mxu0
  %299 = vdwg.mxu0
  %v300 = vxor.u32 %v297, 2147483648
  %v301 = vmul.f32 %v300, 1.442695
  %v302 = vpow.pop %v301
  %v303 = vadd.f32 %v302, 1.0
  %v304 = vrcp.pop %v303
  %v305 = vmul.f32 1.0, %v304
  %v306 = vld [vmem:[%s7] sm:$0xff]
  %v307 = vld [vmem:[%s7 + $0x8] sm:$0xff]
  %v308 = vld [vmem:[%s8] sm:$0x1]
  %v310 = vlaneseq
  %v311 = vshrl.u32 %v310, 7
  %v312 = vsub.s32 0, %v311
  %v313 = vrot.slane %v308, %v312
  %v316 = vsel %vm135, %v305, 0
  %318 = vmatprep.subr.mxu0 0.0
  %319 = vmatpush1.msra.mxu0 %v306
  %320 = vmatprep.subr.mxu0 0.0
  %321 = vmatpush1.msra.mxu0 %v307
  %322 = vmatprep.subr.mxu0 0.0
  %323 = vmatpush1.msra.mxu0 0.0
  %324 = vmatprep.subr.mxu0 0.0
  %325 = vmatpush1.msra.mxu0 0.0
  %326 = vmatprep.subr.mxu0 0.0
  %327 = vmatpush1.msra.mxu0 0.0
  %328 = vmatprep.subr.mxu0 0.0
  %329 = vmatpush1.msra.mxu0 0.0
  %330 = vmatprep.subr.mxu0 0.0
  %331 = vmatpush1.msra.mxu0 0.0
  %332 = vmatprep.subr.mxu0 0.0
  %333 = vmatpush1.msra.mxu0 0.0
  %334 = vmatprep.subr.mxu0 0.0
  %335 = vmatpush1.msra.mxu0 0.0
  %336 = vmatprep.subr.mxu0 0.0
  %337 = vmatpush1.msra.mxu0 0.0
  %338 = vmatprep.subr.mxu0 0.0
  %339 = vmatpush1.msra.mxu0 0.0
  %340 = vmatprep.subr.mxu0 0.0
  %341 = vmatpush1.msra.mxu0 0.0
  %342 = vmatprep.subr.mxu0 0.0
  %343 = vmatpush1.msra.mxu0 0.0
  %344 = vmatprep.subr.mxu0 0.0
  %345 = vmatpush1.msra.mxu0 0.0
  %346 = vmatprep.subr.mxu0 0.0
  %347 = vmatpush1.msra.mxu0 0.0
  %348 = vmatprep.subr.mxu0 0.0
  %349 = vmatpush1.msra.mxu0 0.0
  %350 = vmatprep.subr.mxu0 0.0
  %351 = vmatpush1.msra.mxu0 0.0
  %352 = vmatprep.subr.mxu0 0.0
  %353 = vmatpush1.msra.mxu0 0.0
  %354 = vmatprep.subr.mxu0 0.0
  %355 = vmatpush1.msra.mxu0 0.0
  %356 = vmatprep.subr.mxu0 0.0
  %357 = vmatpush1.msra.mxu0 0.0
  %358 = vmatprep.subr.mxu0 0.0
  %359 = vmatpush1.msra.mxu0 0.0
  %360 = vmatprep.subr.mxu0 0.0
  %361 = vmatpush1.msra.mxu0 0.0
  %362 = vmatprep.subr.mxu0 0.0
  %363 = vmatpush1.msra.mxu0 0.0
  %364 = vmatprep.subr.mxu0 0.0
  %365 = vmatpush1.msra.mxu0 0.0
  %366 = vmatprep.subr.mxu0 0.0
  %367 = vmatpush1.msra.mxu0 0.0
  %368 = vmatprep.subr.mxu0 0.0
  %369 = vmatpush1.msra.mxu0 0.0
  %370 = vmatprep.subr.mxu0 0.0
  %371 = vmatpush1.msra.mxu0 0.0
  %372 = vmatprep.subr.mxu0 0.0
  %373 = vmatpush1.msra.mxu0 0.0
  %374 = vmatprep.subr.mxu0 0.0
  %375 = vmatpush1.msra.mxu0 0.0
  %376 = vmatprep.subr.mxu0 0.0
  %377 = vmatpush1.msra.mxu0 0.0
  %378 = vmatprep.subr.mxu0 0.0
  %379 = vmatpush1.msra.mxu0 0.0
  %380 = vmatprep.subr.mxu0 0.0
  %381 = vmatpush1.msra.mxu0 0.0
  %382 = vmatprep.mubr.f32.mxu0 0.0
  %383 = vmatmul.mubr.f32.gmra.mrb[0].mxu0 %v316
  %v384 = vpop.f32.mrb[0].mxu0
  %v385 = vadd.f32 %v313, %v384
  %v386 = vpop.f32.mrb[0].mxu0
  %387 = vdwg.mxu0
  %vm388 = vcmask 31744
  %389 = vst.msk [vmem:[%s9] sm:$0xff] %vm388, %v385
  // Predicated region
  $region38: #{tpu_custom_call.1} parent=0 // pred_check
    _
  $region39: #{tpu_custom_call.1} parent=0 // pred_check_branch
    %391 = sbr.rel (0) target = $region41
  $region40: #{tpu_custom_call.1} parent=0 // pred_region
    _
  $region41: #{tpu_custom_call.1} parent=0 // pred_fallthru
    _
  // Predicated region
  $region42: #{tpu_custom_call.1} parent=0 // pred_check
    _
  $region43: #{tpu_custom_call.1} parent=0 // pred_check_branch
    %393 = sbr.rel (0) target = $region45
  $region44: #{tpu_custom_call.1} parent=0 // pred_region
    _
  $region45: #{tpu_custom_call.1} parent=0 // pred_fallthru
    _

</llo_original>
